<compile_context>
chip_gen: v6e
topology: v6e:2x2x1
jax: 0.10.0
libtpu: 0.0.40
codegen_flags: <defaults>
</compile_context>

<pallas_src>
import math

import jax
import jax.numpy as jnp
from jax.experimental import pallas as pl
from jax.experimental.pallas import tpu as pltpu


def critic_drr_kernel(x_ref, w1_ref, b1_ref, w2_ref, b2_ref, out_ref):
    """One batch tile, batch on lanes.

    x_ref:   (K, TB)  f32   streamed input tile, x^T = [state, action]^T
    w1_ref:  (H, K)   bf16  layer-1 weight (PyTorch (out, in) layout), resident
    b1_ref:  (H, 1)   f32   layer-1 bias column, resident
    w2_ref:  (H, 1)   f32   layer-2 weight column, resident
    b2_ref:  (1,)     f32   layer-2 bias scalar, SMEM
    out_ref: (1, TB)  f32   lane-dense output row
    """
    x = x_ref[...].astype(w1_ref.dtype)                       # (K, TB) bf16
    # h^T = W1 @ x^T   (MXU, f32 accumulation), bias + ReLU in f32.
    h = jnp.dot(w1_ref[...], x, preferred_element_type=jnp.float32)   # (H, TB)
    h = jnp.maximum(h + b1_ref[...], 0.0)
    # Layer 2 (H -> 1) as a VPU multiply + sublane (XLU) reduction: result is
    # already lane-dense (1, TB); no N=1 MXU matmul, no masked store.
    y = jnp.sum(h * w2_ref[...], axis=0, keepdims=True) + b2_ref[0]    # (1, TB)
    out_ref[...] = y.astype(out_ref.dtype)


def _round_up(x, m):
    return ((x + m - 1) // m) * m


def _pick_batch_tile(batch, block_b):
    """Largest lane tile <= block_b (multiple of 128), keeping >= 2 grid
    blocks when the batch allows it (so v7x megacore can shard the grid)."""
    if batch <= 128:
        return batch                      # single full-extent block
    block_b = max(128, _round_up(block_b, 128))
    return min(block_b, _round_up(-(-batch // 2), 128))


def critic_drr_forward(state, action, w1, b1, w2, b2, *, block_b=1024):
    """
    state:  (B, S) f32
    action: (B, A) f32
    w1:     (H, S+A) bf16   (PyTorch (out, in) layout, pre-cast)
    b1:     (H, 1)   f32
    w2:     (H, 1)   f32
    b2:     (1,)     f32
    returns (B, 1) f32
    """
    B, S = state.shape
    A = action.shape[1]
    H, K = w1.shape
    assert K == S + A and b1.shape == (H, 1) and w2.shape == (H, 1)

    # One fused XLA copy: concat + transpose -> batch-on-lanes (K, B) slab.
    x_t = jnp.concatenate([state, action], axis=1).T          # (K, B) f32

    tb = _pick_batch_tile(B, block_b)
    n_blocks = pl.cdiv(B, tb)

    cost = pl.CostEstimate(
        flops=2 * B * (K * H + H),
        transcendentals=0,
        bytes_accessed=4 * B * (K + 1) + 2 * H * K + 4 * (2 * H + 1),
    )

    grid_spec = pltpu.PrefetchScalarGridSpec(
        num_scalar_prefetch=0,
        grid=(n_blocks,),
        in_specs=[
            pl.BlockSpec((K, tb), lambda i: (0, i)),           # streamed x^T tile
            pl.BlockSpec((H, K), lambda i: (0, 0)),            # W1: VMEM resident
            pl.BlockSpec((H, 1), lambda i: (0, 0)),            # b1: VMEM resident
            pl.BlockSpec((H, 1), lambda i: (0, 0)),            # w2: VMEM resident
            pl.BlockSpec(memory_space=pltpu.MemorySpace.SMEM), # b2: SMEM scalar
        ],
        out_specs=pl.BlockSpec((1, tb), lambda i: (0, i)),     # lane-dense row
    )

    out = pl.pallas_call(
        critic_drr_kernel,
        out_shape=jax.ShapeDtypeStruct((1, B), jnp.float32),
        grid_spec=grid_spec,
        compiler_params=pltpu.CompilerParams(
            dimension_semantics=("parallel",)),
        cost_estimate=cost,
    )(x_t, w1, b1, w2, b2)

    return out.reshape(B, 1)                                   # free reshape


def init_params(key, state_repr_dim, action_emb_dim, hidden_dim):
    """Mimics the PyTorch module: kaiming_uniform_ (bound = sqrt(6/fan_in))
    on weights, default nn.Linear bias init (uniform(+-1/sqrt(fan_in))).

    Layouts are chosen for the kernel: W1 kept in PyTorch (out, in) layout and
    pre-cast to bf16 (MXU operand); b1/w2 as f32 columns (VPU/XLU path); b2 as
    a (1,) f32 SMEM scalar.
    """
    K = state_repr_dim + action_emb_dim
    H = hidden_dim
    k1, k2, k3, k4 = jax.random.split(key, 4)

    bw1 = math.sqrt(6.0 / K)
    w1 = jax.random.uniform(k1, (H, K), jnp.float32, -bw1, bw1)
    bb1 = 1.0 / math.sqrt(K)
    b1 = jax.random.uniform(k2, (H, 1), jnp.float32, -bb1, bb1)

    bw2 = math.sqrt(6.0 / H)
    w2 = jax.random.uniform(k3, (H, 1), jnp.float32, -bw2, bw2)
    bb2 = 1.0 / math.sqrt(H)
    b2 = jax.random.uniform(k4, (1,), jnp.float32, -bb2, bb2)

    return w1.astype(jnp.bfloat16), b1, w2, b2


def _reference(state, action, params, first_dtype=jnp.bfloat16):
    """Pure-JAX reference with the kernel's precision recipe."""
    w1, b1, w2, b2 = params
    x = jnp.concatenate([state, action], axis=1)
    h = jnp.dot(x.astype(first_dtype), w1.astype(first_dtype).T,
                preferred_element_type=jnp.float32) + b1[:, 0][None, :]
    h = jnp.maximum(h, 0.0)
    y = jnp.dot(h, w2.astype(jnp.float32)) + b2[0]
    return y


if __name__ == "__main__":
    embedding_dim = 8
    state_repr_dim = 3 * embedding_dim    # 24 (DRR state = 3 concatenated embeddings)
    action_emb_dim = embedding_dim        # 8
    hidden_dim = 32
    batch = 256                           # 2 grid blocks of 128 lanes

    key = jax.random.PRNGKey(0)
    k_s, k_a, k_p = jax.random.split(key, 3)
    state = jax.random.normal(k_s, (batch, state_repr_dim), jnp.float32)
    action = jax.random.normal(k_a, (batch, action_emb_dim), jnp.float32)
    params = init_params(k_p, state_repr_dim, action_emb_dim, hidden_dim)

    out = jax.block_until_ready(critic_drr_forward(state, action, *params))
    assert out.shape == (batch, 1)

    # Matched-precision reference (bf16 layer-1 inputs, f32 accumulate) — tight.
    ref = _reference(state, action, params, jnp.bfloat16)
    assert jnp.allclose(out, ref, atol=2e-3, rtol=2e-3)

    # f32-input reference — loose sanity check on bf16 matmul error.
    ref32 = _reference(state, action, params, jnp.float32)
    assert jnp.allclose(out, ref32, atol=5e-2, rtol=5e-2)

    # Ragged batch: exercises the cdiv grid + masked edge block (no wrapper pad).
    out_r = jax.block_until_ready(critic_drr_forward(state[:130], action[:130], *params))
    assert out_r.shape == (130, 1)
    assert jnp.allclose(out_r, ref[:130], atol=2e-3, rtol=2e-3)

    # Tiny batch: single full-extent block path.
    out_s = jax.block_until_ready(critic_drr_forward(state[:2], action[:2], *params))
    assert out_s.shape == (2, 1)
    assert jnp.allclose(out_s, ref[:2], atol=2e-3, rtol=2e-3)

    print("KERNEL_OK")
</pallas_src>

<mosaic_0001>
module attributes {stable_mosaic.version = 11 : i64} {
  func.func @critic_drr_kernel(%arg0: i32, %arg1: memref<32x128xf32, #tpu.memory_space<vmem>>, %arg2: memref<32x32xbf16, #tpu.memory_space<vmem>>, %arg3: memref<32x1xf32, #tpu.memory_space<vmem>>, %arg4: memref<32x1xf32, #tpu.memory_space<vmem>>, %arg5: memref<1xf32, #tpu.memory_space<smem>>, %arg6: memref<1x128xf32, #tpu.memory_space<vmem>>) attributes {dimension_semantics = [#tpu.dimension_semantics<parallel>], iteration_bounds = array<i64: 2>, scalar_prefetch = 0 : i64, scratch_operands = 0 : i64, tpu.core_type = #tpu.core_type<tc>, window_params = [{transform_indices = @transform_0, window_bounds = array<i64: 32, 128>}, {pipeline_mode = #tpu.pipeline_mode<synchronous>, transform_indices = @transform_1, window_bounds = array<i64: 32, 32>}, {pipeline_mode = #tpu.pipeline_mode<synchronous>, transform_indices = @transform_2, window_bounds = array<i64: 32, 1>}, {pipeline_mode = #tpu.pipeline_mode<synchronous>, transform_indices = @transform_3, window_bounds = array<i64: 32, 1>}, {transform_indices = @transform_4, window_bounds = array<i64: 1>}, {transform_indices = @transform_5, window_bounds = array<i64: 1, 128>}]} {
    %c0 = arith.constant 0 : index
    %c0_0 = arith.constant 0 : index
    %0 = vector.load %arg1[%c0, %c0_0] : memref<32x128xf32, #tpu.memory_space<vmem>>, vector<32x128xf32>
    %1 = arith.truncf %0 : vector<32x128xf32> to vector<32x128xbf16>
    %c0_1 = arith.constant 0 : index
    %c0_2 = arith.constant 0 : index
    %2 = vector.load %arg2[%c0_1, %c0_2] : memref<32x32xbf16, #tpu.memory_space<vmem>>, vector<32x32xbf16>
    %cst = arith.constant dense<0.000000e+00> : vector<32x128xf32>
    %3 = tpu.matmul %2, %1, %cst {dimension_numbers = #tpu.dot_dimension_numbers<[1], [0], [0], [1], [0, 0, 1, 1], [], []>} : vector<32x32xbf16>, vector<32x128xbf16>, vector<32x128xf32> -> vector<32x128xf32>
    %c0_3 = arith.constant 0 : index
    %c0_4 = arith.constant 0 : index
    %4 = vector.load %arg3[%c0_3, %c0_4] : memref<32x1xf32, #tpu.memory_space<vmem>>, vector<32x1xf32>
    %5 = vector.broadcast %4 : vector<32x1xf32> to vector<32x128xf32>
    %6 = arith.addf %3, %5 : vector<32x128xf32>
    %cst_5 = arith.constant 0.000000e+00 : f32
    %7 = vector.broadcast %cst_5 : f32 to vector<32x128xf32>
    %8 = arith.maximumf %6, %7 : vector<32x128xf32>
    %c0_6 = arith.constant 0 : index
    %c0_7 = arith.constant 0 : index
    %9 = vector.load %arg4[%c0_6, %c0_7] : memref<32x1xf32, #tpu.memory_space<vmem>>, vector<32x1xf32>
    %10 = vector.broadcast %9 : vector<32x1xf32> to vector<32x128xf32>
    %11 = arith.mulf %8, %10 : vector<32x128xf32>
    %cst_8 = arith.constant dense<0.000000e+00> : vector<128xf32>
    %12 = vector.multi_reduction <add>, %11, %cst_8 [0] : vector<32x128xf32> to vector<128xf32>
    %13 = vector.shape_cast %12 : vector<128xf32> to vector<1x128xf32>
    %c0_9 = arith.constant 0 : index
    %14 = memref.load %arg5[%c0_9] : memref<1xf32, #tpu.memory_space<smem>>
    %15 = vector.broadcast %14 : f32 to vector<1x128xf32>
    %16 = arith.addf %13, %15 : vector<1x128xf32>
    %c0_10 = arith.constant 0 : index
    %c0_11 = arith.constant 0 : index
    %17 = vector.load %arg6[%c0_10, %c0_11] : memref<1x128xf32, #tpu.memory_space<vmem>>, vector<1x128xf32>
    tpu.vector_store %arg6[%c0_10, %c0_11], %16 {strides = array<i32>} : memref<1x128xf32, #tpu.memory_space<vmem>>, vector<1x128xf32>,
    return
  }
  func.func @transform_0(%arg0: i32) -> (i32, i32) {
    %c0_i32 = arith.constant 0 : i32
    %c0_i32_0 = arith.constant 0 : i32
    return %c0_i32, %arg0 : i32, i32
  }
  func.func @transform_1(%arg0: i32) -> (i32, i32) {
    %c0_i32 = arith.constant 0 : i32
    %c0_i32_0 = arith.constant 0 : i32
    %c0_i32_1 = arith.constant 0 : i32
    return %c0_i32, %c0_i32_0 : i32, i32
  }
  func.func @transform_2(%arg0: i32) -> (i32, i32) {
    %c0_i32 = arith.constant 0 : i32
    %c0_i32_0 = arith.constant 0 : i32
    %c0_i32_1 = arith.constant 0 : i32
    return %c0_i32, %c0_i32_0 : i32, i32
  }
  func.func @transform_3(%arg0: i32) -> (i32, i32) {
    %c0_i32 = arith.constant 0 : i32
    %c0_i32_0 = arith.constant 0 : i32
    %c0_i32_1 = arith.constant 0 : i32
    return %c0_i32, %c0_i32_0 : i32, i32
  }
  func.func @transform_4(%arg0: i32) -> i32 {
    %c0_i32 = arith.constant 0 : i32
    %c0_i32_0 = arith.constant 0 : i32
    return %c0_i32 : i32
  }
  func.func @transform_5(%arg0: i32) -> (i32, i32) {
    %c0_i32 = arith.constant 0 : i32
    %c0_i32_0 = arith.constant 0 : i32
    return %c0_i32, %arg0 : i32, i32
  }
}

</mosaic_0001>

<llo_original>
// kernel: tpu_custom_call.1
$region0: #{tpu_custom_call.1}
  #allocation0 [shape = 'u32[]', space=smem, size = 0x4, offset = 0x4, fixed_abs, tag = 'smem constant byte address 0x4 - core index']
  #allocation1 [shape = 'u32[144,128]{1,0:T(1,128)}', space=vmem, size = 0x12000, scoped, tag = 'internal scratch']
  #allocation2 [shape = 'f32[1]{0:T(128)S(6)}', space=smem, size = 0x200, scoped, tag = 'scoped memory for tpu_custom_call.1']
  %s0 = inlined_call_operand.vmem [shape: f32[32,256], index: 0, kind: input, shape index: {}]
  %s1 = inlined_call_operand.hbm [shape: bf16[32,32], index: 1, kind: input, shape index: {}]
  %s2 = inlined_call_operand.vmem [shape: f32[32,1], index: 2, kind: input, shape index: {}]
  %s3 = inlined_call_operand.vmem [shape: f32[32,1], index: 3, kind: input, shape index: {}]
  %s4 = inlined_call_operand.<no memory space> [shape: f32[1], index: 4, kind: input, shape index: {}]
  %s5 = inlined_call_operand.hbm [shape: f32[1,256], index: 5, kind: output, shape index: {}]
  %s6 = sld [smem:[#allocation0]]
  $region95: #{tpu_custom_call.1} parent=0
    _
  %s8 = ssub.s32 1, %s6
  %s9 = scalar_select 0, %s8, %s6
  %10 = sst [smem:[#allocation2]] %s4
  $region1: #{tpu_custom_call.1} parent=0
    #allocation3 [shape = 'u8[32768]{0}', space=vmem, size = 0x8000, scoped, tag = 'input window, operand 0']
    #allocation4 [shape = 'u8[8192]{0}', space=vmem, size = 0x2000, scoped, tag = 'input window, operand 1, single buffered']
    #allocation5 [shape = 's32[2]{0}', space=sflag, size = 0x8, scoped, tag = 'scoped memory for tpu_custom_call.1']
    #allocation6 [shape = 's32[2]{0}', space=sflag, size = 0x8, scoped, tag = 'scoped memory for tpu_custom_call.1']
    #allocation7 [shape = 'u8[1024]{0}', space=vmem, size = 0x400, scoped, tag = 'output window, operand 0']
    %11 = vsyncpa [#allocation5], 0
    %12 = vsyncpa [#allocation6], 0
    %s13 = scalar_lea.sflag [#allocation6], 1
    %14 = vsyncpa %s13, 0
    loop: start=0, step=1, limit=4
    $region2: #{tpu_custom_call.1} parent=1 // loop_pre_header
      _
    $region3: #{tpu_custom_call.1} parent=1 // loop_header
      %s16 = sphi 0, %s20
      %p17 = scmp.ge.s32.totalorder %s16, 4
      %s26 = sphi 0, %s28
      %s29 = sphi 0, %s26
      %s30 = sphi 0, %s29
      %s46 = sphi 0, %s30
      %s50 = sphi 0, %s50
      %s52 = sphi 0, %s50
      %s53 = sphi 0, %s52
      %s67 = sphi 0, %s53
      %s71 = sphi 0, %s71
      %s73 = sphi 0, %s71
      %s74 = sphi 0, %s73
      %s88 = sphi 0, %s74
      %s92 = sphi 0, %s92
      %s94 = sphi 0, %s92
      %s95 = sphi 0, %s94
      %s109 = sphi 0, %s95
      %s113 = sphi 0, %s113
      %s115 = sphi 0, %s113
      %s116 = sphi 0, %s115
      %s130 = sphi 0, %s116
      %s136 = sphi 0, %s138
      %s139 = sphi 0, %s136
      %s140 = sphi 0, %s139
      %s156 = sphi 0, %s140
    $region4: #{tpu_custom_call.1} parent=1 // loop_header_branch
      %19 = sbr.rel (%p17) target = $region8
    $region5: #{tpu_custom_call.1} parent=1 // loop_body
      %s21 = ssub.s32 %s16, 1
      %s22 = ssub.s32 %s16, 2
      %s23 = sadd.s32 %s16, 1
      %s24 = ssub.s32 %s16, %s23
      %p25 = scmp.eq.s32.totalorder %s24, 0
      %s27 = sadd.s32 %s26, 1
      %s28 = scalar_select %p25, %s26, %s27
      %p31 = pneg %p25
      %p32 = scmp.eq.s32.totalorder %s16, 1
      %p33 = por %p31, %p32
      %p34 = scmp.ne.s32.totalorder %s26, %s29
      %p35 = scmp.eq.s32.totalorder %s16, 0
      %p36 = por %p34, %p35
      %p37 = scmp.ne.s32.totalorder %s26, %s29
      %p38 = scmp.eq.s32.totalorder %s21, 1
      %p39 = por %p37, %p38
      %p40 = scmp.ne.s32.totalorder %s29, %s30
      %p41 = scmp.eq.s32.totalorder %s21, 0
      %p42 = por %p40, %p41
      %p43 = scmp.ne.s32.totalorder %s29, %s30
      %p44 = scmp.eq.s32.totalorder %s22, 1
      %p45 = por %p43, %p44
      %p47 = scmp.ne.s32.totalorder %s30, %s46
      %p48 = scmp.eq.s32.totalorder %s22, 0
      %p49 = por %p47, %p48
      %s51 = sadd.s32 %s50, 1
      %p54 = scmp.eq.s32.totalorder %s16, 1
      %p55 = scmp.ne.s32.totalorder %s50, %s52
      %p56 = scmp.eq.s32.totalorder %s16, 0
      %p57 = por %p55, %p56
      %p58 = scmp.ne.s32.totalorder %s50, %s52
      %p59 = scmp.eq.s32.totalorder %s21, 1
      %p60 = por %p58, %p59
      %p61 = scmp.ne.s32.totalorder %s52, %s53
      %p62 = scmp.eq.s32.totalorder %s21, 0
      %p63 = por %p61, %p62
      %p64 = scmp.ne.s32.totalorder %s52, %s53
      %p65 = scmp.eq.s32.totalorder %s22, 1
      %p66 = por %p64, %p65
      %p68 = scmp.ne.s32.totalorder %s53, %s67
      %p69 = scmp.eq.s32.totalorder %s22, 0
      %p70 = por %p68, %p69
      %s72 = sadd.s32 %s71, 1
      %p75 = scmp.eq.s32.totalorder %s16, 1
      %p76 = scmp.ne.s32.totalorder %s71, %s73
      %p77 = scmp.eq.s32.totalorder %s16, 0
      %p78 = por %p76, %p77
      %p79 = scmp.ne.s32.totalorder %s71, %s73
      %p80 = scmp.eq.s32.totalorder %s21, 1
      %p81 = por %p79, %p80
      %p82 = scmp.ne.s32.totalorder %s73, %s74
      %p83 = scmp.eq.s32.totalorder %s21, 0
      %p84 = por %p82, %p83
      %p85 = scmp.ne.s32.totalorder %s73, %s74
      %p86 = scmp.eq.s32.totalorder %s22, 1
      %p87 = por %p85, %p86
      %p89 = scmp.ne.s32.totalorder %s74, %s88
      %p90 = scmp.eq.s32.totalorder %s22, 0
      %p91 = por %p89, %p90
      %s93 = sadd.s32 %s92, 1
      %p96 = scmp.eq.s32.totalorder %s16, 1
      %p97 = scmp.ne.s32.totalorder %s92, %s94
      %p98 = scmp.eq.s32.totalorder %s16, 0
      %p99 = por %p97, %p98
      %p100 = scmp.ne.s32.totalorder %s92, %s94
      %p101 = scmp.eq.s32.totalorder %s21, 1
      %p102 = por %p100, %p101
      %p103 = scmp.ne.s32.totalorder %s94, %s95
      %p104 = scmp.eq.s32.totalorder %s21, 0
      %p105 = por %p103, %p104
      %p106 = scmp.ne.s32.totalorder %s94, %s95
      %p107 = scmp.eq.s32.totalorder %s22, 1
      %p108 = por %p106, %p107
      %p110 = scmp.ne.s32.totalorder %s95, %s109
      %p111 = scmp.eq.s32.totalorder %s22, 0
      %p112 = por %p110, %p111
      %s114 = sadd.s32 %s113, 1
      %p117 = scmp.eq.s32.totalorder %s16, 1
      %p118 = scmp.ne.s32.totalorder %s113, %s115
      %p119 = scmp.eq.s32.totalorder %s16, 0
      %p120 = por %p118, %p119
      %p121 = scmp.ne.s32.totalorder %s113, %s115
      %p122 = scmp.eq.s32.totalorder %s21, 1
      %p123 = por %p121, %p122
      %p124 = scmp.ne.s32.totalorder %s115, %s116
      %p125 = scmp.eq.s32.totalorder %s21, 0
      %p126 = por %p124, %p125
      %p127 = scmp.ne.s32.totalorder %s115, %s116
      %p128 = scmp.eq.s32.totalorder %s22, 1
      %p129 = por %p127, %p128
      %p131 = scmp.ne.s32.totalorder %s116, %s130
      %p132 = scmp.eq.s32.totalorder %s22, 0
      %p133 = por %p131, %p132
      %s134 = ssub.s32 %s16, %s23
      %p135 = scmp.eq.s32.totalorder %s134, 0
      %s137 = sadd.s32 %s136, 1
      %s138 = scalar_select %p135, %s136, %s137
      %p141 = pneg %p135
      %p142 = scmp.eq.s32.totalorder %s16, 1
      %p143 = por %p141, %p142
      %p144 = scmp.ne.s32.totalorder %s136, %s139
      %p145 = scmp.eq.s32.totalorder %s16, 0
      %p146 = por %p144, %p145
      %p147 = scmp.ne.s32.totalorder %s136, %s139
      %p148 = scmp.eq.s32.totalorder %s21, 1
      %p149 = por %p147, %p148
      %p150 = scmp.ne.s32.totalorder %s139, %s140
      %p151 = scmp.eq.s32.totalorder %s21, 0
      %p152 = por %p150, %p151
      %p153 = scmp.ne.s32.totalorder %s139, %s140
      %p154 = scmp.eq.s32.totalorder %s22, 1
      %p155 = por %p153, %p154
      %p157 = scmp.ne.s32.totalorder %s140, %s156
      %p158 = scmp.eq.s32.totalorder %s22, 0
      %p159 = por %p157, %p158
      %p160 = scmp.le.s32.totalorder 1, %s16
      %p161 = scmp.lt.s32.totalorder %s16, 3
      %p162 = pnand %p160, %p161
      %p163 = pneg %p162
      // Predicated region
      $region9: #{tpu_custom_call.1} parent=5 // pred_check
        _
      $region10: #{tpu_custom_call.1} parent=5 // pred_check_branch
        %165 = sbr.rel (%p162) target = $region12
      $region11: #{tpu_custom_call.1} parent=5 // pred_region
        %s166 = ssub.s32 %s16, 1
        // Predicated region
        $region13: #{tpu_custom_call.1} parent=11 // pred_check
          %p167 = pneg %p63
        $region14: #{tpu_custom_call.1} parent=11 // pred_check_branch
          %169 = sbr.rel (%p167) target = $region16
        $region15: #{tpu_custom_call.1} parent=11 // pred_region
          %s171 = ssub.s32 256, 256
          %172 = vsyncadd [#allocation5], %s171
          %s173 = sshll.u32 [#allocation4], 4
          %s174 = int_to_ptr.vmem [resolvable:$true] %s173
          %179 = dma.hbm_to_vmem [thread:$0]  %s1, 256, %s174, [#allocation5], 64, 64, 4
        $region16: #{tpu_custom_call.1} parent=11 // pred_fallthru
          _
        // Predicated region
        $region17: #{tpu_custom_call.1} parent=11 // pred_check
          %p180 = pneg %p84
        $region18: #{tpu_custom_call.1} parent=11 // pred_check_branch
          %182 = sbr.rel (%p180) target = $region20
        $region19: #{tpu_custom_call.1} parent=11 // pred_region
          _
        $region20: #{tpu_custom_call.1} parent=11 // pred_fallthru
          _
        // Predicated region
        $region21: #{tpu_custom_call.1} parent=11 // pred_check
          %p183 = pneg %p105
        $region22: #{tpu_custom_call.1} parent=11 // pred_check_branch
          %185 = sbr.rel (%p183) target = $region24
        $region23: #{tpu_custom_call.1} parent=11 // pred_region
          _
        $region24: #{tpu_custom_call.1} parent=11 // pred_fallthru
          _
        // Predicated region
        $region25: #{tpu_custom_call.1} parent=11 // pred_check
          %p186 = pneg %p126
        $region26: #{tpu_custom_call.1} parent=11 // pred_check_branch
          %188 = sbr.rel (%p186) target = $region28
        $region27: #{tpu_custom_call.1} parent=11 // pred_region
          _
        $region28: #{tpu_custom_call.1} parent=11 // pred_fallthru
          _
      $region12: #{tpu_custom_call.1} parent=5 // pred_fallthru
        _
      %p189 = scmp.lt.s32.totalorder %s16, 2
      // Predicated region
      $region29: #{tpu_custom_call.1} parent=5 // pred_check
        %p190 = pneg %p189
      $region30: #{tpu_custom_call.1} parent=5 // pred_check_branch
        %192 = sbr.rel (%p190) target = $region32
      $region31: #{tpu_custom_call.1} parent=5 // pred_region
        // Predicated region
        $region33: #{tpu_custom_call.1} parent=31 // pred_check
          %p193 = pneg %p36
        $region34: #{tpu_custom_call.1} parent=31 // pred_check_branch
          %195 = sbr.rel (%p193) target = $region36
        $region35: #{tpu_custom_call.1} parent=31 // pred_region
          %s196 = sand.u32 %s26, 1
          %s197 = sand.u32 %s26, 1
          %s198 = smul.addr %s197, 32
          %s199 = scalar_lea.vmem [#allocation3], %s198
          %s200 = smul.addr %s16, 8
          %s201 = scalar_lea.vmem %s0, %s200
          // Predicated region
          $region37: #{tpu_custom_call.1} parent=35 // pred_check
            _
          $region38: #{tpu_custom_call.1} parent=35 // pred_check_branch
            %203 = sbr.rel (0) target = $region40
          $region39: #{tpu_custom_call.1} parent=35 // pred_region
            // Predicated region
            $region41: #{tpu_custom_call.1} parent=39 // pred_check
              _
            $region42: #{tpu_custom_call.1} parent=39 // pred_check_branch
              %205 = sbr.rel (0) target = $region44
            $region43: #{tpu_custom_call.1} parent=39 // pred_region
              // Predicated region
              $region56: #{tpu_custom_call.1} parent=43 // pred_check
                _
              $region57: #{tpu_custom_call.1} parent=43 // pred_check_branch
                %227 = sbr.rel (0) target = $region59
              $region58: #{tpu_custom_call.1} parent=43 // pred_region
                loop: start=0, step=1, limit=1
                $region60: #{tpu_custom_call.1} parent=58 // loop_pre_header
                  _
                $region61: #{tpu_custom_call.1} parent=58 // loop_header
                  %s229 = sphi 0, %s233
                  %p230 = scmp.ge.s32.totalorder %s229, 1
                  %s234 = sphi %s201, %s201
                  %s235 = sphi %s199, %s199
                $region62: #{tpu_custom_call.1} parent=58 // loop_header_branch
                  %232 = sbr.rel (%p230) target = $region66
                $region63: #{tpu_custom_call.1} parent=58 // loop_body
                  %v236 = vld [vmem:[%s234] sm:$0xff]
                  %237 = vst [vmem:[%s235] sm:$0xff] %v236
                  %v238 = vld [vmem:[%s234 + $0x10] sm:$0xff]
                  %239 = vst [vmem:[%s235 + $0x8] sm:$0xff] %v238
                  %v240 = vld [vmem:[%s234 + $0x20] sm:$0xff]
                  %241 = vst [vmem:[%s235 + $0x10] sm:$0xff] %v240
                  %v242 = vld [vmem:[%s234 + $0x30] sm:$0xff]
                  %243 = vst [vmem:[%s235 + $0x18] sm:$0xff] %v242
                $region64: #{tpu_custom_call.1} parent=58 // loop_footer
                  %s233 = sadd.s32 1, %s229
                $region65: #{tpu_custom_call.1} parent=58 // loop_footer_branch
                  %228 = sbr.rel target = $region61
                $region66: #{tpu_custom_call.1} parent=58 // loop_exit
                  _
              $region59: #{tpu_custom_call.1} parent=43 // pred_fallthru
                _
              // Predicated region
              $region67: #{tpu_custom_call.1} parent=43 // pred_check
                _
              $region68: #{tpu_custom_call.1} parent=43 // pred_check_branch
                %245 = sbr.rel target = $region70
              $region69: #{tpu_custom_call.1} parent=43 // pred_region
                _
              $region70: #{tpu_custom_call.1} parent=43 // pred_fallthru
                _
            $region44: #{tpu_custom_call.1} parent=39 // pred_fallthru
              _
            // Predicated region
            $region45: #{tpu_custom_call.1} parent=39 // pred_check
              _
            $region46: #{tpu_custom_call.1} parent=39 // pred_check_branch
              %207 = sbr.rel target = $region48
            $region47: #{tpu_custom_call.1} parent=39 // pred_region
              %s209 = ssub.s32 256, 1
              loop: start=0, step=1, limit=1
              $region49: #{tpu_custom_call.1} parent=47 // loop_pre_header
                _
              $region50: #{tpu_custom_call.1} parent=47 // loop_header
                %s211 = sphi 0, %s215
                %p212 = scmp.ge.s32.totalorder %s211, 1
                %s216 = sphi %s201, %s201
                %s217 = sphi %s199, %s199
              $region51: #{tpu_custom_call.1} parent=47 // loop_header_branch
                %214 = sbr.rel (%p212) target = $region55
              $region52: #{tpu_custom_call.1} parent=47 // loop_body
                %v218 = vld [vmem:[%s216] sm:%s209]
                %219 = vst [vmem:[%s217] sm:%s209] %v218
                %v220 = vld [vmem:[%s216 + $0x10] sm:%s209]
                %221 = vst [vmem:[%s217 + $0x8] sm:%s209] %v220
                %v222 = vld [vmem:[%s216 + $0x20] sm:%s209]
                %223 = vst [vmem:[%s217 + $0x10] sm:%s209] %v222
                %v224 = vld [vmem:[%s216 + $0x30] sm:%s209]
                %225 = vst [vmem:[%s217 + $0x18] sm:%s209] %v224
              $region53: #{tpu_custom_call.1} parent=47 // loop_footer
                %s215 = sadd.s32 1, %s211
              $region54: #{tpu_custom_call.1} parent=47 // loop_footer_branch
                %210 = sbr.rel target = $region50
              $region55: #{tpu_custom_call.1} parent=47 // loop_exit
                _
            $region48: #{tpu_custom_call.1} parent=39 // pred_fallthru
              _
          $region40: #{tpu_custom_call.1} parent=35 // pred_fallthru
            _
          %246 = vnop
        $region36: #{tpu_custom_call.1} parent=31 // pred_fallthru
          _
      $region32: #{tpu_custom_call.1} parent=5 // pred_fallthru
        _
      %p247 = scmp.le.s32.totalorder 1, %s16
      %p248 = scmp.lt.s32.totalorder %s16, 3
      %p249 = pnand %p247, %p248
      %p250 = pneg %p249
      // Predicated region
      $region71: #{tpu_custom_call.1} parent=5 // pred_check
        _
      $region72: #{tpu_custom_call.1} parent=5 // pred_check_branch
        %252 = sbr.rel (%p249) target = $region74
      $region73: #{tpu_custom_call.1} parent=5 // pred_region
        %s253 = ssub.s32 %s16, 1
        %s254 = sand.u32 %s29, 1
        %s255 = sand.u32 %s29, 1
        %s256 = smul.addr %s255, 32
        %s257 = scalar_lea.vmem [#allocation3], %s256
        // Predicated region
        $region75: #{tpu_custom_call.1} parent=73 // pred_check
          %p258 = pneg %p42
        $region76: #{tpu_custom_call.1} parent=73 // pred_check_branch
          %260 = sbr.rel (%p258) target = $region78
        $region77: #{tpu_custom_call.1} parent=73 // pred_region
          _
        $region78: #{tpu_custom_call.1} parent=73 // pred_fallthru
          _
        // Predicated region
        $region79: #{tpu_custom_call.1} parent=73 // pred_check
          %p261 = pneg %p63
        $region80: #{tpu_custom_call.1} parent=73 // pred_check_branch
          %263 = sbr.rel (%p261) target = $region82
        $region81: #{tpu_custom_call.1} parent=73 // pred_region
          %264 = dma.done [#allocation5], 256
        $region82: #{tpu_custom_call.1} parent=73 // pred_fallthru
          _
        %s265 = sand.u32 %s29, 1
        %s266 = sand.u32 %s29, 1
        %s267 = smul.addr %s266, 32
        %s268 = scalar_lea.vmem [#allocation3], %s267
        %p269 = pneg %p42
        %p270 = pneg %p39
        %p271 = pneg %p63
        %p272 = pneg %p60
        %p273 = pneg %p84
        %p274 = pneg %p81
        %p275 = pneg %p105
        %p276 = pneg %p102
        %p277 = pneg %p126
        %p278 = pneg %p123
        %p279 = pneg %p152
        %p280 = pneg %p149
        %s281 = sand.u32 %s139, 1
        %s282 = scalar_lea.sflag [#allocation6], %s281
        %s283 = sand.u32 %s139, 1
        %s284 = scalar_lea.vmem [#allocation7], %s283
        %v286 = vld [vmem:[%s257] sm:$0xff]
        %v287 = vld [vmem:[%s257 + $0x8] sm:$0xff]
        %v288 = vld [vmem:[%s257 + $0x10] sm:$0xff]
        %v289 = vld [vmem:[%s257 + $0x18] sm:$0xff]
        %v290 = vpack.c.bf16 %v287, %v286
        %v291 = vpack.c.bf16 %v289, %v288
        %v292 = vld [vmem:[#allocation4] sm:$0xf]
        %v293 = vld [vmem:[#allocation4 + $0x4] sm:$0xf]
        %v294 = vld [vmem:[#allocation4 + $0x8] sm:$0xf]
        %v295 = vld [vmem:[#allocation4 + $0xc] sm:$0xf]
        %v296 = vld [vmem:[%s2] sm:$0xff]
        %v297 = vld [vmem:[%s2 + $0x8] sm:$0xff]
        %v298 = vld [vmem:[%s2 + $0x10] sm:$0xff]
        %v299 = vld [vmem:[%s2 + $0x18] sm:$0xff]
        %301 = vset.pattern.permute.xlu0 0
        %302 = vperm.xlu0 %301, %v296
        %v303 = vpop.permute.xlu0 %302
        %306 = vset.pattern.permute.xlu0 0
        %307 = vperm.xlu0 %306, %v297
        %v308 = vpop.permute.xlu0 %307
        %311 = vset.pattern.permute.xlu0 0
        %312 = vperm.xlu0 %311, %v298
        %v313 = vpop.permute.xlu0 %312
        %316 = vset.pattern.permute.xlu0 0
        %317 = vperm.xlu0 %316, %v299
        %v318 = vpop.permute.xlu0 %317
        %v324 = vunpack.c.l.b16 %v292
        %v325 = vunpack.c.l.b16 %v293
        %v326 = vunpack.c.l.b16 %v294
        %v327 = vunpack.c.l.b16 %v295
        %v328 = vpack.c.b16 %v325, %v324
        %v329 = vpack.c.b16 %v327, %v326
        %vm330 = vcmask 261120
        %v332 = vsel %vm330, %v328, 0
        %v335 = vsel %vm330, %v329, 0
        %337 = vmatprep.subr.bf16.mxu0 0
        %338 = vmatpush1.bf16.msra.mxu0 0
        %339 = vmatprep.subr.bf16.mxu0 0
        %340 = vmatpush1.bf16.msra.mxu0 0
        %341 = vmatprep.subr.bf16.mxu0 0
        %342 = vmatpush1.bf16.msra.mxu0 0
        %343 = vmatprep.subr.bf16.mxu0 0
        %344 = vmatpush1.bf16.msra.mxu0 0
        %345 = vmatprep.subr.bf16.mxu0 0
        %346 = vmatpush1.bf16.msra.mxu0 0
        %347 = vmatprep.subr.bf16.mxu0 0
        %348 = vmatpush1.bf16.msra.mxu0 0
        %349 = vmatprep.subr.bf16.mxu0 0
        %350 = vmatpush1.bf16.msra.mxu0 %v291
        %351 = vmatprep.subr.bf16.mxu0 0
        %352 = vmatpush1.bf16.msra.mxu0 %v290
        %353 = vmatprep.subr.bf16.mxu0 0
        %354 = vmatpush2.bf16.msra.mxu0 0
        %355 = vmatprep.subr.bf16.mxu0 0
        %356 = vmatpush2.bf16.msra.mxu0 0
        %357 = vmatprep.subr.bf16.mxu0 0
        %358 = vmatpush2.bf16.msra.mxu0 0
        %359 = vmatprep.subr.bf16.mxu0 0
        %360 = vmatpush2.bf16.msra.mxu0 0
        %361 = vmatprep.subr.bf16.mxu0 0
        %362 = vmatpush2.bf16.msra.mxu0 0
        %363 = vmatprep.subr.bf16.mxu0 0
        %364 = vmatpush2.bf16.msra.mxu0 0
        %365 = vmatprep.subr.bf16.mxu0 0
        %366 = vmatpush2.bf16.msra.mxu0 0
        %367 = vmatprep.subr.bf16.mxu0 0
        %368 = vmatpush2.bf16.msra.mxu0 0
        %369 = vmatprep.mubr.bf16.mxu0 0
        %370 = vmatmul.mubr.bf16.gmra.mxu0 %v332
        %v371 = vpop.f32.mrf.mxu0
        %v372 = vadd.f32 %v303, %v371
        %v373 = vpop.f32.mrf.mxu0
        %v374 = vpop.f32.mrf.mxu0
        %v375 = vadd.f32 %v308, %v374
        %v376 = vpop.f32.mrf.mxu0
        %377 = vmatprep.mubr.bf16.mxu0 0
        %378 = vmatmul.mubr.bf16.gmra.mxu0 %v335
        %v379 = vpop.f32.mrf.mxu0
        %v380 = vadd.f32 %v313, %v379
        %v381 = vpop.f32.mrf.mxu0
        %v382 = vpop.f32.mrf.mxu0
        %v383 = vadd.f32 %v318, %v382
        %v384 = vpop.f32.mrf.mxu0
        %385 = vdwg.mxu0
        %v386 = vmax.f32 %v372, 0.0
        %v387 = vmax.f32 %v375, 0.0
        %v388 = vmax.f32 %v380, 0.0
        %v389 = vmax.f32 %v383, 0.0
        %v390 = vld [vmem:[%s3] sm:$0xff]
        %v391 = vld [vmem:[%s3 + $0x8] sm:$0xff]
        %v392 = vld [vmem:[%s3 + $0x10] sm:$0xff]
        %v393 = vld [vmem:[%s3 + $0x18] sm:$0xff]
        %395 = vset.pattern.permute.xlu0 0
        %396 = vperm.xlu0 %395, %v390
        %v397 = vpop.permute.xlu0 %396
        %400 = vset.pattern.permute.xlu0 0
        %401 = vperm.xlu0 %400, %v391
        %v402 = vpop.permute.xlu0 %401
        %405 = vset.pattern.permute.xlu0 0
        %406 = vperm.xlu0 %405, %v392
        %v407 = vpop.permute.xlu0 %406
        %410 = vset.pattern.permute.xlu0 0
        %411 = vperm.xlu0 %410, %v393
        %v412 = vpop.permute.xlu0 %411
        %v414 = vmul.f32 %v386, %v397
        %v415 = vmul.f32 %v387, %v402
        %v416 = vmul.f32 %v388, %v407
        %v417 = vmul.f32 %v389, %v412
        %v418 = vadd.f32 %v414, %v415
        %v419 = vadd.f32 %v418, %v416
        %v420 = vadd.f32 %v419, %v417
        %v421 = vrot.slane %v420, 4
        %v422 = vadd.f32 %v420, %v421
        %v423 = vrot.slane %v422, 2
        %v424 = vadd.f32 %v422, %v423
        %v425 = vrot.slane %v424, 1
        %v426 = vadd.f32 %v424, %v425
        %s427 = sld [smem:[#allocation2]]
        %v428 = vstv %s427
        %v429 = vadd.f32 %v426, %v428
        %430 = vst [vmem:[%s284] sm:$0x1] %v429
        %s431 = sand.u32 %s139, 1
        %s432 = scalar_lea.sflag [#allocation6], %s431
        %s433 = sand.u32 %s139, 1
        %s434 = scalar_lea.vmem [#allocation7], %s433
        // Predicated region
        $region83: #{tpu_custom_call.1} parent=73 // pred_check
          %p435 = pneg %p149
        $region84: #{tpu_custom_call.1} parent=73 // pred_check_branch
          %437 = sbr.rel (%p435) target = $region86
        $region85: #{tpu_custom_call.1} parent=73 // pred_region
          %s439 = ssub.s32 16, 16
          %440 = vsyncadd %s432, %s439
          %s441 = smul.addr %s21, 16
          %s442 = scalar_lea.hbm %s5, %s441
          %s444 = sshll.u32 %s434, 4
          %s445 = int_to_ptr.vmem [resolvable:$true] %s444
          %447 = dma.vmem_to_hbm [thread:$0]  %s445, 16, %s442, %s432
        $region86: #{tpu_custom_call.1} parent=73 // pred_fallthru
          _
      $region74: #{tpu_custom_call.1} parent=5 // pred_fallthru
        _
      %p448 = scmp.le.s32.totalorder 2, %s16
      // Predicated region
      $region87: #{tpu_custom_call.1} parent=5 // pred_check
        %p449 = pneg %p448
      $region88: #{tpu_custom_call.1} parent=5 // pred_check_branch
        %451 = sbr.rel (%p449) target = $region90
      $region89: #{tpu_custom_call.1} parent=5 // pred_region
        %s452 = ssub.s32 %s16, 2
        // Predicated region
        $region91: #{tpu_custom_call.1} parent=89 // pred_check
          %p453 = pneg %p155
        $region92: #{tpu_custom_call.1} parent=89 // pred_check_branch
          %455 = sbr.rel (%p453) target = $region94
        $region93: #{tpu_custom_call.1} parent=89 // pred_region
          %s456 = sand.u32 %s140, 1
          %s457 = scalar_lea.sflag [#allocation6], %s456
          %s458 = sand.u32 %s140, 1
          %s459 = scalar_lea.vmem [#allocation7], %s458
          %460 = dma.done %s457, 16
        $region94: #{tpu_custom_call.1} parent=89 // pred_fallthru
          _
      $region90: #{tpu_custom_call.1} parent=5 // pred_fallthru
        _
    $region6: #{tpu_custom_call.1} parent=1 // loop_footer
      %s20 = sadd.s32 1, %s16
    $region7: #{tpu_custom_call.1} parent=1 // loop_footer_branch
      %15 = sbr.rel target = $region3
    $region8: #{tpu_custom_call.1} parent=1 // loop_exit
      _
    %461 = vsyncpa [#allocation5], 1
    %s462 = scalar_lea.sflag [#allocation5], 1
    %463 = vsyncpa %s462, 1
    %464 = vsyncpa [#allocation6], 1
    %s465 = scalar_lea.sflag [#allocation6], 1
    %466 = vsyncpa %s465, 1

</llo_original>
